<compile_context>
chip_gen: v6e
topology: v6e:2x2x1
jax: 0.10.0
libtpu: 0.0.40
codegen_flags: <defaults>
</compile_context>

<pallas_src>
import functools
import math

import jax
import jax.numpy as jnp
from jax import lax
from jax.experimental import pallas as pl
from jax.experimental.pallas import tpu as pltpu


def _int_pow(x, e: int):
    """x**e for small positive integer e via exponentiation by squaring (pure VALU)."""
    result = None
    while e > 0:
        if e & 1:
            result = x if result is None else result * x
        e >>= 1
        if e:
            x = x * x
    return result


def _karras_kernel(params_ref, o_ref, *, rho: float, ncols: int):
    """params_ref: SMEM (3,) f32 = [sigma_max**(1/rho), smin_rinv - smax_rinv, 1/(n-1)].
    o_ref: VMEM (8, ncols) f32, sublane- and lane-dense."""
    smax_rinv = params_ref[0]
    delta = params_ref[1]
    inv_nm1 = params_ref[2]

    # Flat step index over the (8, ncols) tile: step = row*ncols + col.
    row = lax.broadcasted_iota(jnp.int32, o_ref.shape, dimension=0)
    col = lax.broadcasted_iota(jnp.int32, o_ref.shape, dimension=1)
    steps = (row * jnp.int32(ncols) + col).astype(jnp.float32)

    # Affine interpolation in sigma**(1/rho) space.
    base = smax_rinv + (steps * inv_nm1) * delta

    if float(rho).is_integer() and 1.0 <= rho <= 32.0:
        # Integer rho (default 7): repeated multiply, no transcendentals at all.
        sig = _int_pow(base, int(rho))
    else:
        # Non-integer rho: one log + one exp per element (EUP). Clamp so padded
        # lanes (steps > n-1 => base may go <= 0) never produce NaN/Inf.
        safe = jnp.maximum(base, jnp.float32(1e-30))
        sig = jnp.exp(jnp.float32(rho) * jnp.log(safe))

    o_ref[...] = sig


def karras_schedule(sigma_min: float, sigma_max: float,
                    rho: float = 7.0, num_steps: int = 50,
                    return_padded: bool = False) -> jax.Array:
    """Returns sigmas of shape (num_steps,) float32, matching KarrasSchedule.forward().

    With return_padded=True, returns the flat padded (8*ncols,) array instead
    (consumer indexes the first num_steps entries); avoids a separate slice op.
    """
    rho = float(rho)
    # Sublane- and lane-dense padded layout: 8 rows x (multiple of 128) cols.
    ncols = max(128, ((num_steps + 1023) // 1024) * 128)

    # Host-side constants (float64 -> f32 matches PyTorch's python-float ** then
    # promotion into the f32 tensor arithmetic).
    rho_inv = 1.0 / rho
    smax_rinv = float(sigma_max) ** rho_inv
    smin_rinv = float(sigma_min) ** rho_inv
    inv_nm1 = 0.0 if num_steps <= 1 else 1.0 / float(num_steps - 1)
    params = jnp.array([smax_rinv, smin_rinv - smax_rinv, inv_nm1], dtype=jnp.float32)

    n_elems = 8 * ncols
    is_int_rho = rho.is_integer() and 1.0 <= rho <= 32.0
    pow_flops = max(int(rho).bit_length() + bin(int(rho)).count("1") - 2, 1) if is_int_rho else 1
    cost = pl.CostEstimate(
        flops=(3 + pow_flops) * n_elems,
        transcendentals=0 if is_int_rho else 2 * n_elems,
        bytes_accessed=4 * n_elems + 12,
    )

    kernel = functools.partial(_karras_kernel, rho=rho, ncols=ncols)

    out = pl.pallas_call(
        kernel,
        out_shape=jax.ShapeDtypeStruct((8, ncols), jnp.float32),
        in_specs=[pl.BlockSpec(memory_space=pltpu.MemorySpace.SMEM)],
        out_specs=pl.BlockSpec((8, ncols), lambda: (0, 0)),
        cost_estimate=cost,
    )(params)

    flat = out.reshape(n_elems)
    if return_padded:
        return flat
    return flat[:num_steps]  # -> (num_steps,)


if __name__ == "__main__":
    # Module has no tensor inputs; hyperparameters are fixed at init.
    # (PRNGKey kept only to satisfy the deterministic-setup convention.)
    _ = jax.random.PRNGKey(0)

    def _ref(sigma_min, sigma_max, rho, num_steps):
        rho_inv = 1.0 / rho
        steps = jnp.arange(num_steps, dtype=jnp.float32)
        return (sigma_max ** rho_inv
                + steps / (num_steps - 1) * (sigma_min ** rho_inv - sigma_max ** rho_inv)) ** rho

    # Case 1: default integer rho (pure-VALU power path).
    sigma_min, sigma_max, rho, num_steps = 0.002, 80.0, 7.0, 50
    sigmas = jax.block_until_ready(karras_schedule(sigma_min, sigma_max, rho, num_steps))
    ref = _ref(sigma_min, sigma_max, rho, num_steps)
    assert sigmas.shape == (num_steps,)
    assert sigmas.dtype == jnp.float32
    assert jnp.allclose(sigmas, ref, rtol=1e-5, atol=1e-6), (sigmas, ref)

    # Case 2: non-integer rho (exp/log fallback path).
    rho2 = 7.5
    sigmas2 = jax.block_until_ready(karras_schedule(sigma_min, sigma_max, rho2, num_steps))
    ref2 = _ref(sigma_min, sigma_max, rho2, num_steps)
    assert jnp.allclose(sigmas2, ref2, rtol=1e-5, atol=1e-6), (sigmas2, ref2)

    # Case 3: num_steps spanning multiple sublane rows of the (8, ncols) tile.
    num_steps3 = 300
    sigmas3 = jax.block_until_ready(karras_schedule(sigma_min, sigma_max, rho, num_steps3))
    ref3 = _ref(sigma_min, sigma_max, rho, num_steps3)
    assert sigmas3.shape == (num_steps3,)
    assert jnp.allclose(sigmas3, ref3, rtol=1e-5, atol=1e-6), (sigmas3, ref3)

    # Case 4: num_steps == 1 -> sigma_max (documented divergence from PyTorch's NaN).
    sigma1 = jax.block_until_ready(karras_schedule(sigma_min, sigma_max, rho, 1))
    assert jnp.allclose(sigma1, jnp.float32(sigma_max), rtol=1e-5), sigma1

    print("KERNEL_OK")
</pallas_src>

<mosaic_0001>
module attributes {stable_mosaic.version = 11 : i64} {
  func.func @_karras_kernel(%arg0: memref<3xf32, #tpu.memory_space<smem>>, %arg1: memref<8x128xf32, #tpu.memory_space<vmem>>) attributes {dimension_semantics = [], scalar_prefetch = 0 : i64, scratch_operands = 0 : i64, tpu.core_type = #tpu.core_type<tc>} {
    %c0 = arith.constant 0 : index
    %0 = memref.load %arg0[%c0] : memref<3xf32, #tpu.memory_space<smem>>
    %c1 = arith.constant 1 : index
    %1 = memref.load %arg0[%c1] : memref<3xf32, #tpu.memory_space<smem>>
    %c2 = arith.constant 2 : index
    %2 = memref.load %arg0[%c2] : memref<3xf32, #tpu.memory_space<smem>>
    %3 = tpu.iota {dimensions = array<i32: 0>} : vector<8x128xi32>
    %4 = tpu.iota {dimensions = array<i32: 1>} : vector<8x128xi32>
    %c128_i32 = arith.constant 128 : i32
    %5 = vector.broadcast %c128_i32 : i32 to vector<8x128xi32>
    %6 = arith.muli %3, %5 : vector<8x128xi32>
    %7 = arith.addi %6, %4 : vector<8x128xi32>
    %8 = arith.sitofp %7 : vector<8x128xi32> to vector<8x128xf32>
    %9 = vector.broadcast %2 : f32 to vector<8x128xf32>
    %10 = arith.mulf %8, %9 : vector<8x128xf32>
    %11 = vector.broadcast %1 : f32 to vector<8x128xf32>
    %12 = arith.mulf %10, %11 : vector<8x128xf32>
    %13 = vector.broadcast %0 : f32 to vector<8x128xf32>
    %14 = arith.addf %13, %12 : vector<8x128xf32>
    %15 = arith.mulf %14, %14 : vector<8x128xf32>
    %16 = arith.mulf %14, %15 : vector<8x128xf32>
    %17 = arith.mulf %15, %15 : vector<8x128xf32>
    %18 = arith.mulf %16, %17 : vector<8x128xf32>
    %c0_0 = arith.constant 0 : index
    %c0_1 = arith.constant 0 : index
    %19 = vector.load %arg1[%c0_0, %c0_1] : memref<8x128xf32, #tpu.memory_space<vmem>>, vector<8x128xf32>
    tpu.vector_store %arg1[%c0_0, %c0_1], %18 {strides = array<i32>} : memref<8x128xf32, #tpu.memory_space<vmem>>, vector<8x128xf32>,
    return
  }
}

</mosaic_0001>

<llo_original>
// kernel: tpu_custom_call.1
$region0: #{tpu_custom_call.1}
  #allocation0 [shape = 'u32[]', space=smem, size = 0x4, offset = 0x4, fixed_abs, tag = 'smem constant byte address 0x4 - core index']
  #allocation1 [shape = 'u32[144,128]{1,0:T(1,128)}', space=vmem, size = 0x12000, scoped, tag = 'internal scratch']
  %s0 = inlined_call_operand.hbm [shape: f32[3], index: 0, kind: input, shape index: {}]
  %s1 = inlined_call_operand.hbm [shape: f32[8,128], index: 1, kind: output, shape index: {}]
  %s2 = sld [smem:[#allocation0]]
  $region18: #{tpu_custom_call.1} parent=0
    _
  %s4 = ssub.s32 1, %s2
  %s5 = scalar_select 0, %s4, %s2
  $region1: #{tpu_custom_call.1} parent=0
    #allocation2 [shape = 'u8[512]{0}', space=smem, size = 0x200, scoped, tag = 'input window, operand 0, single buffered']
    #allocation3 [shape = 's32[1]{0}', space=sflag, size = 0x4, scoped, tag = 'scoped memory for tpu_custom_call.1']
    #allocation4 [shape = 's32[1]{0}', space=sflag, size = 0x4, scoped, tag = 'scoped memory for tpu_custom_call.1']
    #allocation5 [shape = 'u8[4096]{0}', space=vmem, size = 0x1000, scoped, tag = 'output window, operand 0, single buffered']
    %6 = vsyncpa [#allocation4], 0
    %7 = vsyncpa [#allocation3], 0
    // Predicated region
    $region2: #{tpu_custom_call.1} parent=1 // pred_check
      _
    $region3: #{tpu_custom_call.1} parent=1 // pred_check_branch
      %9 = sbr.rel (0) target = $region5
    $region4: #{tpu_custom_call.1} parent=1 // pred_region
      %s11 = ssub.s32 16, 16
      %12 = vsyncadd [#allocation4], %s11
      %15 = dma.hbm_to_smem %s0, 16, [#allocation2], [#allocation4]
    $region5: #{tpu_custom_call.1} parent=1 // pred_fallthru
      _
    // Predicated region
    $region6: #{tpu_custom_call.1} parent=1 // pred_check
      _
    $region7: #{tpu_custom_call.1} parent=1 // pred_check_branch
      %17 = sbr.rel (0) target = $region9
    $region8: #{tpu_custom_call.1} parent=1 // pred_region
      %18 = dma.done [#allocation4], 16
    $region9: #{tpu_custom_call.1} parent=1 // pred_fallthru
      _
    %19 = sfence
    %s20 = sld [smem:[#allocation2]]
    %s21 = sld [smem:[#allocation2 + $0x1]]
    %s22 = sld [smem:[#allocation2 + $0x2]]
    %v23 = vlaneseq
    %v24 = vshrl.u32 %v23, 7
    %v25 = vlaneseq
    %v26 = vand.u32 %v25, 127
    %v27 = vmul.u32 %v24, 128
    %v28 = vadd.s32 %v27, %v26
    %v29 = vcvt.s32.f32 %v28
    %v30 = vstv %s22
    %v31 = vmul.f32 %v29, %v30
    %v32 = vstv %s21
    %v33 = vmul.f32 %v31, %v32
    %v34 = vstv %s20
    %v35 = vadd.f32 %v34, %v33
    %v36 = vmul.f32 %v35, %v35
    %v37 = vmul.f32 %v35, %v36
    %v38 = vmul.f32 %v36, %v36
    %v39 = vmul.f32 %v37, %v38
    %40 = vst [vmem:[#allocation5] sm:$0xff] %v39
    // Predicated region
    $region10: #{tpu_custom_call.1} parent=1 // pred_check
      _
    $region11: #{tpu_custom_call.1} parent=1 // pred_check_branch
      %42 = sbr.rel (0) target = $region13
    $region12: #{tpu_custom_call.1} parent=1 // pred_region
      %s44 = ssub.s32 128, 128
      %45 = vsyncadd [#allocation3], %s44
      %s47 = sshll.u32 [#allocation5], 4
      %s48 = int_to_ptr.vmem [resolvable:$true] %s47
      %50 = dma.vmem_to_hbm [thread:$0]  %s48, 128, %s1, [#allocation3]
    $region13: #{tpu_custom_call.1} parent=1 // pred_fallthru
      _
    // Predicated region
    $region14: #{tpu_custom_call.1} parent=1 // pred_check
      _
    $region15: #{tpu_custom_call.1} parent=1 // pred_check_branch
      %52 = sbr.rel (0) target = $region17
    $region16: #{tpu_custom_call.1} parent=1 // pred_region
      %53 = dma.done [#allocation3], 128
    $region17: #{tpu_custom_call.1} parent=1 // pred_fallthru
      _
    %54 = vsyncpa [#allocation3], 1
    %55 = vsyncpa [#allocation4], 1

</llo_original>
